<compile_context>
chip_gen: v5e
topology: v5e:2x2
jax: 0.10.0
libtpu: 0.0.40
codegen_flags: <defaults>
</compile_context>

<pallas_src>
import jax
import jax.numpy as jnp
from jax.experimental import pallas as pl
from jax.experimental.pallas import tpu as pltpu

H1, H2, OUT = 256, 128, 32  # fc1/fc2/fc3 output widths
MAX_TILE = 2048             # rows per grid step (upper bound)


def krk_mlp_kernel(x_ref, w1_ref, w2_ref, w3_ref, b_ref, o_ref):
    x = x_ref[...]  # (TM, C) bf16

    # Packed biases (f32): static slices at 128-lane-aligned offsets (0, 256, 384).
    b1 = b_ref[:, 0:H1]                    # (1, 256)
    b2 = b_ref[:, H1:H1 + H2]              # (1, 128)
    b3 = b_ref[:, H1 + H2:H1 + H2 + OUT]   # (1, 32)

    # fc1: bf16 MXU operands, f32 accumulation; bias add + relu in f32 (VPU).
    h1 = jnp.dot(x, w1_ref[...], preferred_element_type=jnp.float32) + b1
    h1 = jnp.maximum(h1, 0.0)

    # fc2: cast activation to bf16 only at the dot input.
    h2 = jnp.dot(h1.astype(jnp.bfloat16), w2_ref[...],
                 preferred_element_type=jnp.float32) + b2
    h2 = jnp.maximum(h2, 0.0)

    # fc3
    logits = jnp.dot(h2.astype(jnp.bfloat16), w3_ref[...],
                     preferred_element_type=jnp.float32) + b3

    # log_softmax along dim=1 (last axis), max-shifted, all f32.
    m = jnp.max(logits, axis=-1, keepdims=True)
    shifted = logits - m
    lse = jnp.log(jnp.sum(jnp.exp(shifted), axis=-1, keepdims=True))
    o_ref[...] = shifted - lse


def _round_up(n, m):
    return ((n + m - 1) // m) * m


def _cdiv(a, b):
    return (a + b - 1) // b


def krk_net_forward(x, params, *, max_tile=MAX_TILE):
    """x: (B, num_channels). params: {'w1','w2','w3','b'} with b packed (1, 416) f32."""
    w1, w2, w3, b = params["w1"], params["w2"], params["w3"], params["b"]
    if x.dtype != jnp.float32:  # mirrors PyTorch's x.float()
        x = x.astype(jnp.float32)

    B, C = x.shape
    out_dim = w3.shape[1]

    # Padding-minimizing tile selection.
    #  * B <= max_tile -> single step with tm = round_up(B, 8)  (< 8 wasted rows)
    #  * B  > max_tile -> split evenly so each step is <= max_tile, still < 8 waste
    #  * keep >= 2 steps once B >= 2048 so v7x's second TensorCore isn't idle
    n_steps = _cdiv(B, max_tile)
    if B >= 2048 and n_steps < 2:
        n_steps = 2
    tm = _round_up(_cdiv(B, n_steps), 8)
    b_pad = n_steps * tm

    # bf16 matmul operands (halves x/weight DMA bytes, native MXU rate).
    xb = x.astype(jnp.bfloat16)
    if b_pad != B:
        xb = jnp.pad(xb, ((0, b_pad - B), (0, 0)))
    w1b = w1.astype(jnp.bfloat16)
    w2b = w2.astype(jnp.bfloat16)
    w3b = w3.astype(jnp.bfloat16)

    resident = lambda i: (0, 0)  # weights/bias: same block every step -> VMEM-resident

    cost = pl.CostEstimate(
        flops=2 * b_pad * (C * H1 + H1 * H2 + H2 * out_dim),
        transcendentals=b_pad * (out_dim + 1),  # exp per logit + log per row
        bytes_accessed=(2 * (b_pad * C + w1.size + w2.size + w3.size)  # bf16 operands
                        + 4 * (b.size + b_pad * out_dim)),             # f32 bias/out
    )

    out = pl.pallas_call(
        krk_mlp_kernel,
        out_shape=jax.ShapeDtypeStruct((b_pad, out_dim), jnp.float32),
        grid_spec=pltpu.PrefetchScalarGridSpec(
            num_scalar_prefetch=0,
            grid=(n_steps,),
            in_specs=[
                pl.BlockSpec((tm, C), lambda i: (i, 0)),   # x: tiled over batch
                pl.BlockSpec(w1.shape, resident),
                pl.BlockSpec(w2.shape, resident),
                pl.BlockSpec(w3.shape, resident),
                pl.BlockSpec(b.shape, resident),
            ],
            out_specs=pl.BlockSpec((tm, out_dim), lambda i: (i, 0)),
        ),
        compiler_params=pltpu.CompilerParams(
            # batch tiles are independent -> parallel (lets v7x's 2 TCs split them)
            dimension_semantics=("parallel",),
            # explicit limit with headroom; fits all generations incl. v7x (64 MiB phys)
            vmem_limit_bytes=32 * 1024 * 1024,
        ),
        cost_estimate=cost,
    )(xb, w1b, w2b, w3b, b)

    if b_pad != B:
        out = out[:B]
    return out


def init_params(key, num_channels):
    """Deterministic init mimicking nn.Linear's uniform(-1/sqrt(fan_in), ...).
    Weights stored (in_features, out_features); biases packed into one (1, 416)."""
    dims = [(num_channels, H1), (H1, H2), (H2, OUT)]
    params = {}
    biases = []
    keys = jax.random.split(key, 2 * len(dims))
    for i, (fan_in, fan_out) in enumerate(dims):
        bound = 1.0 / jnp.sqrt(fan_in)
        w = jax.random.uniform(keys[2 * i], (fan_in, fan_out),
                               minval=-bound, maxval=bound, dtype=jnp.float32)
        bb = jax.random.uniform(keys[2 * i + 1], (1, fan_out),
                                minval=-bound, maxval=bound, dtype=jnp.float32)
        params[f"w{i + 1}"] = w
        biases.append(bb)
    params["b"] = jnp.concatenate(biases, axis=-1)  # (1, 416)
    return params


def _reference_forward(x, params):
    """Pure-JAX f32 reference of the PyTorch forward (inference path)."""
    x = x.astype(jnp.float32)
    hp = jax.lax.Precision.HIGHEST
    b = params["b"]
    b1, b2, b3 = b[:, :H1], b[:, H1:H1 + H2], b[:, H1 + H2:]
    h1 = jnp.maximum(jnp.dot(x, params["w1"], precision=hp) + b1, 0.0)
    h2 = jnp.maximum(jnp.dot(h1, params["w2"], precision=hp) + b2, 0.0)
    logits = jnp.dot(h2, params["w3"], precision=hp) + b3
    return jax.nn.log_softmax(logits, axis=-1)


if __name__ == "__main__":
    key = jax.random.PRNGKey(0)
    k_x, k_x2, k_x3, k_p = jax.random.split(key, 4)

    num_channels = 32  # params.num_channels
    params = init_params(k_p, num_channels)

    # Tolerance is loosened vs. a pure-f32 reference because the kernel uses bf16
    # MXU operands (accumulation stays f32).
    TOL = 5e-2

    # Small batch (single grid step, no padding).
    batch = 8
    x = jax.random.normal(k_x, (batch, num_channels), dtype=jnp.float32)
    out = jax.block_until_ready(krk_net_forward(x, params))
    assert out.shape == (batch, OUT)
    row_sums = jnp.sum(jnp.exp(out), axis=-1)
    assert bool(jnp.all(jnp.abs(row_sums - 1.0) < 1e-3))
    ref = _reference_forward(x, params)
    assert bool(jnp.all(jnp.abs(out - ref) < TOL))

    # Batch 600: single step, tm=608 (only 8 padded rows instead of 768-row tile).
    batch2 = 600
    x2 = jax.random.normal(k_x2, (batch2, num_channels), dtype=jnp.float32)
    out2 = jax.block_until_ready(krk_net_forward(x2, params))
    assert out2.shape == (batch2, OUT)
    ref2 = _reference_forward(x2, params)
    assert bool(jnp.all(jnp.abs(out2 - ref2) < TOL))

    # Batch 2048: forced 2 grid steps of 1024 rows (exercises the multi-tile /
    # v7x two-TensorCore path).
    batch3 = 2048
    x3 = jax.random.normal(k_x3, (batch3, num_channels), dtype=jnp.float32)
    out3 = jax.block_until_ready(krk_net_forward(x3, params))
    assert out3.shape == (batch3, OUT)
    ref3 = _reference_forward(x3, params)
    assert bool(jnp.all(jnp.abs(out3 - ref3) < TOL))

    print("KERNEL_OK")
</pallas_src>

<mosaic_0001>
module attributes {stable_mosaic.version = 11 : i64} {
  func.func @krk_mlp_kernel(%arg0: i32, %arg1: memref<8x32xbf16, #tpu.memory_space<vmem>>, %arg2: memref<32x256xbf16, #tpu.memory_space<vmem>>, %arg3: memref<256x128xbf16, #tpu.memory_space<vmem>>, %arg4: memref<128x32xbf16, #tpu.memory_space<vmem>>, %arg5: memref<1x416xf32, #tpu.memory_space<vmem>>, %arg6: memref<8x32xf32, #tpu.memory_space<vmem>>) attributes {dimension_semantics = [#tpu.dimension_semantics<parallel>], iteration_bounds = array<i64: 1>, scalar_prefetch = 0 : i64, scratch_operands = 0 : i64, tpu.core_type = #tpu.core_type<tc>, window_params = [{transform_indices = @transform_0, window_bounds = array<i64: 8, 32>}, {pipeline_mode = #tpu.pipeline_mode<synchronous>, transform_indices = @transform_1, window_bounds = array<i64: 32, 256>}, {pipeline_mode = #tpu.pipeline_mode<synchronous>, transform_indices = @transform_2, window_bounds = array<i64: 256, 128>}, {pipeline_mode = #tpu.pipeline_mode<synchronous>, transform_indices = @transform_3, window_bounds = array<i64: 128, 32>}, {pipeline_mode = #tpu.pipeline_mode<synchronous>, transform_indices = @transform_4, window_bounds = array<i64: 1, 416>}, {transform_indices = @transform_5, window_bounds = array<i64: 8, 32>}]} {
    %c0 = arith.constant 0 : index
    %c0_0 = arith.constant 0 : index
    %0 = vector.load %arg1[%c0, %c0_0] : memref<8x32xbf16, #tpu.memory_space<vmem>>, vector<8x32xbf16>
    %c0_1 = arith.constant 0 : index
    %c0_2 = arith.constant 0 : index
    %1 = vector.load %arg5[%c0_1, %c0_2] : memref<1x416xf32, #tpu.memory_space<vmem>>, vector<1x256xf32>
    %c0_3 = arith.constant 0 : index
    %c256 = arith.constant 256 : index
    %2 = vector.load %arg5[%c0_3, %c256] : memref<1x416xf32, #tpu.memory_space<vmem>>, vector<1x128xf32>
    %c0_4 = arith.constant 0 : index
    %c384 = arith.constant 384 : index
    %3 = vector.load %arg5[%c0_4, %c384] : memref<1x416xf32, #tpu.memory_space<vmem>>, vector<1x32xf32>
    %c0_5 = arith.constant 0 : index
    %c0_6 = arith.constant 0 : index
    %4 = vector.load %arg2[%c0_5, %c0_6] : memref<32x256xbf16, #tpu.memory_space<vmem>>, vector<32x256xbf16>
    %cst = arith.constant dense<0.000000e+00> : vector<8x256xf32>
    %5 = tpu.matmul %0, %4, %cst {dimension_numbers = #tpu.dot_dimension_numbers<[1], [0], [0], [1], [0, 0, 1, 1], [], []>} : vector<8x32xbf16>, vector<32x256xbf16>, vector<8x256xf32> -> vector<8x256xf32>
    %6 = vector.broadcast %1 : vector<1x256xf32> to vector<8x256xf32>
    %7 = arith.addf %5, %6 : vector<8x256xf32>
    %cst_7 = arith.constant 0.000000e+00 : f32
    %8 = vector.broadcast %cst_7 : f32 to vector<8x256xf32>
    %9 = arith.maximumf %7, %8 : vector<8x256xf32>
    %10 = arith.truncf %9 : vector<8x256xf32> to vector<8x256xbf16>
    %c0_8 = arith.constant 0 : index
    %c0_9 = arith.constant 0 : index
    %11 = vector.load %arg3[%c0_8, %c0_9] : memref<256x128xbf16, #tpu.memory_space<vmem>>, vector<256x128xbf16>
    %cst_10 = arith.constant dense<0.000000e+00> : vector<8x128xf32>
    %12 = tpu.matmul %10, %11, %cst_10 {dimension_numbers = #tpu.dot_dimension_numbers<[1], [0], [0], [1], [0, 0, 1, 1], [], []>} : vector<8x256xbf16>, vector<256x128xbf16>, vector<8x128xf32> -> vector<8x128xf32>
    %13 = vector.broadcast %2 : vector<1x128xf32> to vector<8x128xf32>
    %14 = arith.addf %12, %13 : vector<8x128xf32>
    %cst_11 = arith.constant 0.000000e+00 : f32
    %15 = vector.broadcast %cst_11 : f32 to vector<8x128xf32>
    %16 = arith.maximumf %14, %15 : vector<8x128xf32>
    %17 = arith.truncf %16 : vector<8x128xf32> to vector<8x128xbf16>
    %c0_12 = arith.constant 0 : index
    %c0_13 = arith.constant 0 : index
    %18 = vector.load %arg4[%c0_12, %c0_13] : memref<128x32xbf16, #tpu.memory_space<vmem>>, vector<128x32xbf16>
    %cst_14 = arith.constant dense<0.000000e+00> : vector<8x32xf32>
    %19 = tpu.matmul %17, %18, %cst_14 {dimension_numbers = #tpu.dot_dimension_numbers<[1], [0], [0], [1], [0, 0, 1, 1], [], []>} : vector<8x128xbf16>, vector<128x32xbf16>, vector<8x32xf32> -> vector<8x32xf32>
    %20 = vector.broadcast %3 : vector<1x32xf32> to vector<8x32xf32>
    %21 = arith.addf %19, %20 : vector<8x32xf32>
    %cst_15 = arith.constant dense<0xFF800000> : vector<8xf32>
    %22 = vector.multi_reduction <maximumf>, %21, %cst_15 [1] : vector<8x32xf32> to vector<8xf32>
    %23 = vector.shape_cast %22 : vector<8xf32> to vector<8x1xf32>
    %24 = vector.broadcast %23 : vector<8x1xf32> to vector<8x32xf32>
    %25 = arith.subf %21, %24 : vector<8x32xf32>
    %26 = math.exp %25 : vector<8x32xf32>
    %cst_16 = arith.constant dense<0.000000e+00> : vector<8xf32>
    %27 = vector.multi_reduction <add>, %26, %cst_16 [1] : vector<8x32xf32> to vector<8xf32>
    %28 = vector.shape_cast %27 : vector<8xf32> to vector<8x1xf32>
    %29 = math.log %28 : vector<8x1xf32>
    %30 = vector.broadcast %29 : vector<8x1xf32> to vector<8x32xf32>
    %31 = arith.subf %25, %30 : vector<8x32xf32>
    %c0_17 = arith.constant 0 : index
    %c0_18 = arith.constant 0 : index
    %32 = vector.load %arg6[%c0_17, %c0_18] : memref<8x32xf32, #tpu.memory_space<vmem>>, vector<8x32xf32>
    tpu.vector_store %arg6[%c0_17, %c0_18], %31 {strides = array<i32>} : memref<8x32xf32, #tpu.memory_space<vmem>>, vector<8x32xf32>,
    return
  }
  func.func @transform_0(%arg0: i32) -> (i32, i32) {
    %c0_i32 = arith.constant 0 : i32
    %c0_i32_0 = arith.constant 0 : i32
    return %arg0, %c0_i32 : i32, i32
  }
  func.func @transform_1(%arg0: i32) -> (i32, i32) {
    %c0_i32 = arith.constant 0 : i32
    %c0_i32_0 = arith.constant 0 : i32
    %c0_i32_1 = arith.constant 0 : i32
    return %c0_i32, %c0_i32_0 : i32, i32
  }
  func.func @transform_2(%arg0: i32) -> (i32, i32) {
    %c0_i32 = arith.constant 0 : i32
    %c0_i32_0 = arith.constant 0 : i32
    %c0_i32_1 = arith.constant 0 : i32
    return %c0_i32, %c0_i32_0 : i32, i32
  }
  func.func @transform_3(%arg0: i32) -> (i32, i32) {
    %c0_i32 = arith.constant 0 : i32
    %c0_i32_0 = arith.constant 0 : i32
    %c0_i32_1 = arith.constant 0 : i32
    return %c0_i32, %c0_i32_0 : i32, i32
  }
  func.func @transform_4(%arg0: i32) -> (i32, i32) {
    %c0_i32 = arith.constant 0 : i32
    %c0_i32_0 = arith.constant 0 : i32
    %c0_i32_1 = arith.constant 0 : i32
    return %c0_i32, %c0_i32_0 : i32, i32
  }
  func.func @transform_5(%arg0: i32) -> (i32, i32) {
    %c0_i32 = arith.constant 0 : i32
    %c0_i32_0 = arith.constant 0 : i32
    return %arg0, %c0_i32 : i32, i32
  }
}

</mosaic_0001>

<llo_original>
// kernel: tpu_custom_call.1
$region0: #{tpu_custom_call.1}
  #allocation0 [shape = 'u32[]', space=smem, size = 0x4, offset = 0x4, fixed_abs, tag = 'smem constant byte address 0x4 - core index']
  #allocation1 [shape = 'u32[72,128]{1,0:T(1,128)}', space=vmem, size = 0x9000, scoped, tag = 'internal scratch']
  %s0 = inlined_call_operand.vmem [shape: bf16[8,32], index: 0, kind: input, shape index: {}]
  %s1 = inlined_call_operand.vmem [shape: bf16[32,256], index: 1, kind: input, shape index: {}]
  %s2 = inlined_call_operand.hbm [shape: bf16[256,128], index: 2, kind: input, shape index: {}]
  %s3 = inlined_call_operand.vmem [shape: bf16[128,32], index: 3, kind: input, shape index: {}]
  %s4 = inlined_call_operand.vmem [shape: f32[1,416], index: 4, kind: input, shape index: {}]
  %s5 = inlined_call_operand.hbm [shape: f32[8,32], index: 5, kind: output, shape index: {}]
  %s6 = sld [smem:[#allocation0]]
  $region34: #{tpu_custom_call.1} parent=0
    _
  %s8 = ssub.s32 1, %s6
  %s9 = scalar_select 0, %s8, %s6
  $region1: #{tpu_custom_call.1} parent=0
    #allocation2 [shape = 'u8[65536]{0}', space=vmem, size = 0x10000, scoped, tag = 'input window, operand 2, single buffered']
    #allocation3 [shape = 's32[1]{0}', space=sflag, size = 0x4, scoped, tag = 'scoped memory for tpu_custom_call.1']
    #allocation4 [shape = 's32[1]{0}', space=sflag, size = 0x4, scoped, tag = 'scoped memory for tpu_custom_call.1']
    #allocation5 [shape = 'u8[4096]{0}', space=vmem, size = 0x1000, scoped, tag = 'output window, operand 0, single buffered']
    %10 = vsyncpa [#allocation3], 0
    %11 = vsyncpa [#allocation4], 0
    // Predicated region
    $region2: #{tpu_custom_call.1} parent=1 // pred_check
      _
    $region3: #{tpu_custom_call.1} parent=1 // pred_check_branch
      %13 = sbr.rel (0) target = $region5
    $region4: #{tpu_custom_call.1} parent=1 // pred_region
      _
    $region5: #{tpu_custom_call.1} parent=1 // pred_fallthru
      _
    // Predicated region
    $region6: #{tpu_custom_call.1} parent=1 // pred_check
      _
    $region7: #{tpu_custom_call.1} parent=1 // pred_check_branch
      %15 = sbr.rel (0) target = $region9
    $region8: #{tpu_custom_call.1} parent=1 // pred_region
      _
    $region9: #{tpu_custom_call.1} parent=1 // pred_fallthru
      _
    // Predicated region
    $region10: #{tpu_custom_call.1} parent=1 // pred_check
      _
    $region11: #{tpu_custom_call.1} parent=1 // pred_check_branch
      %17 = sbr.rel (0) target = $region13
    $region12: #{tpu_custom_call.1} parent=1 // pred_region
      %19 = vsyncadd [#allocation3], 0
      %s20 = sshll.u32 %s2, 4
      %s21 = int_to_ptr.hbm [resolvable:$true] %s20
      %s22 = sshll.u32 [#allocation2], 4
      %s23 = int_to_ptr.vmem [resolvable:$true] %s22
      %28 = dma.hbm_to_vmem [thread:$0]  %s21, 2048, %s23, [#allocation3], 64, 64, 4
    $region13: #{tpu_custom_call.1} parent=1 // pred_fallthru
      _
    // Predicated region
    $region14: #{tpu_custom_call.1} parent=1 // pred_check
      _
    $region15: #{tpu_custom_call.1} parent=1 // pred_check_branch
      %30 = sbr.rel (0) target = $region17
    $region16: #{tpu_custom_call.1} parent=1 // pred_region
      _
    $region17: #{tpu_custom_call.1} parent=1 // pred_fallthru
      _
    // Predicated region
    $region18: #{tpu_custom_call.1} parent=1 // pred_check
      _
    $region19: #{tpu_custom_call.1} parent=1 // pred_check_branch
      %32 = sbr.rel (0) target = $region21
    $region20: #{tpu_custom_call.1} parent=1 // pred_region
      _
    $region21: #{tpu_custom_call.1} parent=1 // pred_fallthru
      _
    // Predicated region
    $region22: #{tpu_custom_call.1} parent=1 // pred_check
      _
    $region23: #{tpu_custom_call.1} parent=1 // pred_check_branch
      %34 = sbr.rel (0) target = $region25
    $region24: #{tpu_custom_call.1} parent=1 // pred_region
      %36 = dma.done [#allocation3], 2048
    $region25: #{tpu_custom_call.1} parent=1 // pred_fallthru
      _
    %v38 = vld [vmem:[%s0] sm:$0xf]
    %v39 = vld [vmem:[%s4] sm:$0x3]
    %v40 = vld [vmem:[%s4 + $0x2] sm:$0x1]
    %v41 = vld [vmem:[%s4 + $0x3] sm:$0x1]
    %v42 = vld [vmem:[%s1] sm:$0xff]
    %v43 = vld [vmem:[%s1 + $0x8] sm:$0xff]
    %v44 = vld [vmem:[%s1 + $0x10] sm:$0xff]
    %v45 = vld [vmem:[%s1 + $0x18] sm:$0xff]
    %v47 = vperm.slane %v39, 0
    %v48 = vperm.slane %v39, 1
    %v55 = vunpack.c.l.b16 %v42
    %v56 = vunpack.c.h.b16 %v42
    %v57 = vunpack.c.l.b16 %v43
    %v58 = vunpack.c.h.b16 %v43
    %v59 = vunpack.c.l.b16 %v44
    %v60 = vunpack.c.h.b16 %v44
    %v61 = vunpack.c.l.b16 %v45
    %v62 = vunpack.c.h.b16 %v45
    %v63 = vpack.c.b16 %v57, %v55
    %v64 = vpack.c.b16 %v58, %v56
    %v65 = vpack.c.b16 %v61, %v59
    %v66 = vpack.c.b16 %v62, %v60
    %vm71 = vcmask 261120
    %v73 = vsel %vm71, %v38, 0
    %75 = vmatpush.bf16.msra.mxu0 0
    %76 = vmatpush.bf16.msra.mxu0 0
    %77 = vmatpush.bf16.msra.mxu0 0
    %78 = vmatpush.bf16.msra.mxu0 0
    %79 = vmatpush.bf16.msra.mxu0 0
    %80 = vmatpush.bf16.msra.mxu0 0
    %81 = vmatpush.bf16.msra.mxu0 %v65
    %82 = vmatpush.bf16.msra.mxu0 %v63
    %83 = vmatmul.bf16.gmra.mxu0 %v73
    %v84 = vpop.f32.mrf.mxu0
    %v85 = vadd.f32 %v47, %v84
    %v86 = vpop.f32.mrf.mxu0
    %87 = vdwg.mxu0
    %88 = vmatpush.bf16.msra.mxu0 0
    %89 = vmatpush.bf16.msra.mxu0 0
    %90 = vmatpush.bf16.msra.mxu0 0
    %91 = vmatpush.bf16.msra.mxu0 0
    %92 = vmatpush.bf16.msra.mxu0 0
    %93 = vmatpush.bf16.msra.mxu0 0
    %94 = vmatpush.bf16.msra.mxu0 %v66
    %95 = vmatpush.bf16.msra.mxu0 %v64
    %96 = vmatmul.bf16.gmra.mxu0 %v73
    %v97 = vpop.f32.mrf.mxu0
    %v98 = vadd.f32 %v48, %v97
    %v99 = vpop.f32.mrf.mxu0
    %100 = vdwg.mxu0
    %v101 = vmax.f32 %v85, 0.0
    %v102 = vmax.f32 %v98, 0.0
    %v103 = vpack.c.bf16 %v101, %v101
    %v104 = vpack.c.bf16 %v102, %v102
    %v105 = vld [vmem:[#allocation2] sm:$0xf]
    %v106 = vld [vmem:[#allocation2 + $0x4] sm:$0xf]
    %v107 = vld [vmem:[#allocation2 + $0x8] sm:$0xf]
    %v108 = vld [vmem:[#allocation2 + $0xc] sm:$0xf]
    %v109 = vld [vmem:[#allocation2 + $0x10] sm:$0xf]
    %v110 = vld [vmem:[#allocation2 + $0x14] sm:$0xf]
    %v111 = vld [vmem:[#allocation2 + $0x18] sm:$0xf]
    %v112 = vld [vmem:[#allocation2 + $0x1c] sm:$0xf]
    %v113 = vld [vmem:[#allocation2 + $0x20] sm:$0xf]
    %v114 = vld [vmem:[#allocation2 + $0x24] sm:$0xf]
    %v115 = vld [vmem:[#allocation2 + $0x28] sm:$0xf]
    %v116 = vld [vmem:[#allocation2 + $0x2c] sm:$0xf]
    %v117 = vld [vmem:[#allocation2 + $0x30] sm:$0xf]
    %v118 = vld [vmem:[#allocation2 + $0x34] sm:$0xf]
    %v119 = vld [vmem:[#allocation2 + $0x38] sm:$0xf]
    %v120 = vld [vmem:[#allocation2 + $0x3c] sm:$0xf]
    %v121 = vld [vmem:[#allocation2 + $0x40] sm:$0xf]
    %v122 = vld [vmem:[#allocation2 + $0x44] sm:$0xf]
    %v123 = vld [vmem:[#allocation2 + $0x48] sm:$0xf]
    %v124 = vld [vmem:[#allocation2 + $0x4c] sm:$0xf]
    %v125 = vld [vmem:[#allocation2 + $0x50] sm:$0xf]
    %v126 = vld [vmem:[#allocation2 + $0x54] sm:$0xf]
    %v127 = vld [vmem:[#allocation2 + $0x58] sm:$0xf]
    %v128 = vld [vmem:[#allocation2 + $0x5c] sm:$0xf]
    %v129 = vld [vmem:[#allocation2 + $0x60] sm:$0xf]
    %v130 = vld [vmem:[#allocation2 + $0x64] sm:$0xf]
    %v131 = vld [vmem:[#allocation2 + $0x68] sm:$0xf]
    %v132 = vld [vmem:[#allocation2 + $0x6c] sm:$0xf]
    %v133 = vld [vmem:[#allocation2 + $0x70] sm:$0xf]
    %v134 = vld [vmem:[#allocation2 + $0x74] sm:$0xf]
    %v135 = vld [vmem:[#allocation2 + $0x78] sm:$0xf]
    %v136 = vld [vmem:[#allocation2 + $0x7c] sm:$0xf]
    %v138 = vperm.slane %v40, 0
    %v172 = vunpack.c.l.b16 %v105
    %v173 = vunpack.c.l.b16 %v106
    %v174 = vunpack.c.l.b16 %v107
    %v175 = vunpack.c.l.b16 %v108
    %v176 = vunpack.c.l.b16 %v109
    %v177 = vunpack.c.l.b16 %v110
    %v178 = vunpack.c.l.b16 %v111
    %v179 = vunpack.c.l.b16 %v112
    %v180 = vunpack.c.l.b16 %v113
    %v181 = vunpack.c.l.b16 %v114
    %v182 = vunpack.c.l.b16 %v115
    %v183 = vunpack.c.l.b16 %v116
    %v184 = vunpack.c.l.b16 %v117
    %v185 = vunpack.c.l.b16 %v118
    %v186 = vunpack.c.l.b16 %v119
    %v187 = vunpack.c.l.b16 %v120
    %v188 = vunpack.c.l.b16 %v121
    %v189 = vunpack.c.l.b16 %v122
    %v190 = vunpack.c.l.b16 %v123
    %v191 = vunpack.c.l.b16 %v124
    %v192 = vunpack.c.l.b16 %v125
    %v193 = vunpack.c.l.b16 %v126
    %v194 = vunpack.c.l.b16 %v127
    %v195 = vunpack.c.l.b16 %v128
    %v196 = vunpack.c.l.b16 %v129
    %v197 = vunpack.c.l.b16 %v130
    %v198 = vunpack.c.l.b16 %v131
    %v199 = vunpack.c.l.b16 %v132
    %v200 = vunpack.c.l.b16 %v133
    %v201 = vunpack.c.l.b16 %v134
    %v202 = vunpack.c.l.b16 %v135
    %v203 = vunpack.c.l.b16 %v136
    %v204 = vpack.c.b16 %v173, %v172
    %v205 = vpack.c.b16 %v175, %v174
    %v206 = vpack.c.b16 %v177, %v176
    %v207 = vpack.c.b16 %v179, %v178
    %v208 = vpack.c.b16 %v181, %v180
    %v209 = vpack.c.b16 %v183, %v182
    %v210 = vpack.c.b16 %v185, %v184
    %v211 = vpack.c.b16 %v187, %v186
    %v212 = vpack.c.b16 %v189, %v188
    %v213 = vpack.c.b16 %v191, %v190
    %v214 = vpack.c.b16 %v193, %v192
    %v215 = vpack.c.b16 %v195, %v194
    %v216 = vpack.c.b16 %v197, %v196
    %v217 = vpack.c.b16 %v199, %v198
    %v218 = vpack.c.b16 %v201, %v200
    %v219 = vpack.c.b16 %v203, %v202
    %236 = vmatpush.bf16.msra.mxu0 %v211
    %237 = vmatpush.bf16.msra.mxu0 %v210
    %238 = vmatpush.bf16.msra.mxu0 %v209
    %239 = vmatpush.bf16.msra.mxu0 %v208
    %240 = vmatpush.bf16.msra.mxu0 %v207
    %241 = vmatpush.bf16.msra.mxu0 %v206
    %242 = vmatpush.bf16.msra.mxu0 %v205
    %243 = vmatpush.bf16.msra.mxu0 %v204
    %244 = vmatmul.bf16.gmra.mxu0 %v103
    %v245 = vpop.f32.mrf.mxu0
    %v246 = vadd.f32 %v138, %v245
    %v247 = vpop.f32.mrf.mxu0
    %248 = vdwg.mxu0
    %249 = vmatpush.bf16.msra.mxu0 %v219
    %250 = vmatpush.bf16.msra.mxu0 %v218
    %251 = vmatpush.bf16.msra.mxu0 %v217
    %252 = vmatpush.bf16.msra.mxu0 %v216
    %253 = vmatpush.bf16.msra.mxu0 %v215
    %254 = vmatpush.bf16.msra.mxu0 %v214
    %255 = vmatpush.bf16.msra.mxu0 %v213
    %256 = vmatpush.bf16.msra.mxu0 %v212
    %257 = vmatmul.bf16.gmra.mxu0 %v104
    %v258 = vpop.f32.mrf.mxu0
    %v259 = vadd.f32 %v246, %v258
    %v260 = vpop.f32.mrf.mxu0
    %261 = vdwg.mxu0
    %v262 = vmax.f32 %v259, 0.0
    %v263 = vpack.c.bf16 %v262, %v262
    %v264 = vld [vmem:[%s3] sm:$0xf]
    %v265 = vld [vmem:[%s3 + $0x4] sm:$0xf]
    %v266 = vld [vmem:[%s3 + $0x8] sm:$0xf]
    %v267 = vld [vmem:[%s3 + $0xc] sm:$0xf]
    %v268 = vld [vmem:[%s3 + $0x10] sm:$0xf]
    %v269 = vld [vmem:[%s3 + $0x14] sm:$0xf]
    %v270 = vld [vmem:[%s3 + $0x18] sm:$0xf]
    %v271 = vld [vmem:[%s3 + $0x1c] sm:$0xf]
    %v272 = vld [vmem:[%s3 + $0x20] sm:$0xf]
    %v273 = vld [vmem:[%s3 + $0x24] sm:$0xf]
    %v274 = vld [vmem:[%s3 + $0x28] sm:$0xf]
    %v275 = vld [vmem:[%s3 + $0x2c] sm:$0xf]
    %v276 = vld [vmem:[%s3 + $0x30] sm:$0xf]
    %v277 = vld [vmem:[%s3 + $0x34] sm:$0xf]
    %v278 = vld [vmem:[%s3 + $0x38] sm:$0xf]
    %v279 = vld [vmem:[%s3 + $0x3c] sm:$0xf]
    %v281 = vperm.slane %v41, 0
    %v299 = vunpack.c.l.b16 %v264
    %v300 = vunpack.c.l.b16 %v265
    %v301 = vunpack.c.l.b16 %v266
    %v302 = vunpack.c.l.b16 %v267
    %v303 = vunpack.c.l.b16 %v268
    %v304 = vunpack.c.l.b16 %v269
    %v305 = vunpack.c.l.b16 %v270
    %v306 = vunpack.c.l.b16 %v271
    %v307 = vunpack.c.l.b16 %v272
    %v308 = vunpack.c.l.b16 %v273
    %v309 = vunpack.c.l.b16 %v274
    %v310 = vunpack.c.l.b16 %v275
    %v311 = vunpack.c.l.b16 %v276
    %v312 = vunpack.c.l.b16 %v277
    %v313 = vunpack.c.l.b16 %v278
    %v314 = vunpack.c.l.b16 %v279
    %v315 = vpack.c.b16 %v300, %v299
    %v316 = vpack.c.b16 %v302, %v301
    %v317 = vpack.c.b16 %v304, %v303
    %v318 = vpack.c.b16 %v306, %v305
    %v319 = vpack.c.b16 %v308, %v307
    %v320 = vpack.c.b16 %v310, %v309
    %v321 = vpack.c.b16 %v312, %v311
    %v322 = vpack.c.b16 %v314, %v313
    %331 = vmatpush.bf16.msra.mxu0 %v322
    %332 = vmatpush.bf16.msra.mxu0 %v321
    %333 = vmatpush.bf16.msra.mxu0 %v320
    %334 = vmatpush.bf16.msra.mxu0 %v319
    %335 = vmatpush.bf16.msra.mxu0 %v318
    %336 = vmatpush.bf16.msra.mxu0 %v317
    %337 = vmatpush.bf16.msra.mxu0 %v316
    %338 = vmatpush.bf16.msra.mxu0 %v315
    %339 = vmatmul.bf16.gmra.mxu0 %v263
    %v340 = vpop.f32.mrf.mxu0
    %v341 = vadd.f32 %v281, %v340
    %v342 = vpop.f32.mrf.mxu0
    %343 = vdwg.mxu0
    %v344 = vsel %vm71, %v341, -inf
    %345 = vmax.xlane.f32.xlu0 %v344
    %v346 = vpop.xlane.xlu0 %345
    %v347 = vsub.f32 %v341, %v346
    %v348 = vmul.f32 %v347, 1.442695
    %v349 = vpow.pop %v348
    %v350 = vsel %vm71, %v349, 0.0
    %351 = vadd.xlane.f32.xlu0 %v350
    %v352 = vpop.xlane.xlu0 %351
    %v353 = vlog2.pop %v352
    %v354 = vmul.f32 %v353, 0.6931472
    %v355 = vsub.f32 %v347, %v354
    %356 = vst.msk [vmem:[#allocation5] sm:$0xff] %vm71, %v355
    // Predicated region
    $region26: #{tpu_custom_call.1} parent=1 // pred_check
      _
    $region27: #{tpu_custom_call.1} parent=1 // pred_check_branch
      %358 = sbr.rel (0) target = $region29
    $region28: #{tpu_custom_call.1} parent=1 // pred_region
      %360 = vsyncadd [#allocation4], 0
      %s362 = sshll.u32 [#allocation5], 4
      %s363 = int_to_ptr.vmem [resolvable:$true] %s362
      %s364 = sshll.u32 %s5, 4
      %s365 = int_to_ptr.hbm [resolvable:$true] %s364
      %367 = dma.vmem_to_hbm [thread:$0]  %s363, 128, %s365, [#allocation4]
    $region29: #{tpu_custom_call.1} parent=1 // pred_fallthru
      _
    // Predicated region
    $region30: #{tpu_custom_call.1} parent=1 // pred_check
      _
    $region31: #{tpu_custom_call.1} parent=1 // pred_check_branch
      %369 = sbr.rel (0) target = $region33
    $region32: #{tpu_custom_call.1} parent=1 // pred_region
      %371 = dma.done [#allocation4], 128
    $region33: #{tpu_custom_call.1} parent=1 // pred_fallthru
      _
    %372 = vsyncpa [#allocation3], 1
    %373 = vsyncpa [#allocation4], 1

</llo_original>
